<compile_context>
chip_gen: v7x
topology: tpu7x:2x2x1
jax: 0.10.0
libtpu: 0.0.40
codegen_flags: <defaults>
</compile_context>

<pallas_src>
import math
import functools

import jax
import jax.numpy as jnp
from jax.experimental import pallas as pl
from jax.experimental.pallas import tpu as pltpu


def _round_up(x, m):
    return (x + m - 1) // m * m


# ----------------------------------------------------------------------------
# RNNCell.forward kernel: h_next = tanh(x @ Wx + h_prev @ Wh + b)
# (mathematically identical to tanh(cat(x, h_prev) @ W.T + b))
#   x_ref : (bp, in_f)   wx_ref: (in_f, hp)
#   h_ref : (bp, hp)     wh_ref: (hp, hp)
#   b_ref : (1, hp)      o_ref : (bp, hp)
# ----------------------------------------------------------------------------
def _rnncell_kernel(x_ref, h_ref, wx_ref, wh_ref, b_ref, o_ref):
    acc = jnp.dot(x_ref[...], wx_ref[...], preferred_element_type=jnp.float32)
    acc = acc + jnp.dot(h_ref[...], wh_ref[...],
                        preferred_element_type=jnp.float32)
    o_ref[...] = jnp.tanh(acc + b_ref[...]).astype(o_ref.dtype)


def rnncell_forward(W, b, x, h_prev):
    """Exact RNNCell.forward(x, h_prev) via one Pallas call."""
    batch, input_size = x.shape
    hidden = b.shape[0]
    bp = _round_up(batch, 8)       # full f32 sublanes
    hp = _round_up(hidden, 128)    # lane-dense hidden axis

    # Host-side packing: split W = [Wx | Wh] (hidden, in+hidden), transpose,
    # zero-pad so padded lanes/rows never contaminate real values.
    wx = jnp.zeros((input_size, hp), jnp.float32)
    wx = wx.at[:, :hidden].set(W[:, :input_size].T.astype(jnp.float32))
    wh = jnp.zeros((hp, hp), jnp.float32)
    wh = wh.at[:hidden, :hidden].set(W[:, input_size:].T.astype(jnp.float32))
    bb = jnp.zeros((1, hp), jnp.float32)
    bb = bb.at[0, :hidden].set(b.astype(jnp.float32))
    x_p = jnp.zeros((bp, input_size), jnp.float32)
    x_p = x_p.at[:batch, :].set(x.astype(jnp.float32))
    h_p = jnp.zeros((bp, hp), jnp.float32)
    h_p = h_p.at[:batch, :hidden].set(h_prev.astype(jnp.float32))

    out = pl.pallas_call(
        _rnncell_kernel,
        out_shape=jax.ShapeDtypeStruct((bp, hp), jnp.float32),
    )(x_p, h_p, wx, wh, bb)
    return out[:batch, :hidden].astype(x.dtype)


# ----------------------------------------------------------------------------
# Fused per-layer kernel for the RNN built from RNNCell.
#   x_ref : (seq*bp, in_f)     whole (padded) sequence, time-major, flattened
#   wx_ref: (1, in_f, hp)      this direction's input weights (padded)
#   wh_ref: (1, hp, hp)        recurrent weights (padded)
#   b_ref : (1, 1, hp)         bias (padded)
#   h0_ref: (1, bp, hp)        initial hidden state (padded)
#   y_ref : (seq*bp, hp)       this direction's 128-lane output slab
# ----------------------------------------------------------------------------
def _rnn_layer_kernel(x_ref, wx_ref, wh_ref, b_ref, h0_ref, y_ref, *, seq, bp):
    d = pl.program_id(0)

    # Phase 1: hoisted, time-independent input projection + bias.
    xproj = (jnp.dot(x_ref[...], wx_ref[0],
                     preferred_element_type=jnp.float32)
             + b_ref[0])                                   # (seq*bp, hp)

    wh = wh_ref[0]                                         # (hp, hp)
    h0 = h0_ref[0].astype(jnp.float32)                     # (bp, hp)

    # Phase 2: serial recurrence; h carried as a value (vregs); statically
    # unrolled loop -> static sublane-aligned offsets, lane-dense 128-wide
    # stores every step.
    def scan(time_index):
        h = h0
        for s in range(seq):
            t = time_index(s)
            h = jnp.tanh(
                xproj[t * bp:(t + 1) * bp, :]
                + jnp.dot(h, wh, preferred_element_type=jnp.float32))
            y_ref[t * bp:(t + 1) * bp, :] = h.astype(y_ref.dtype)

    @pl.when(d == 0)
    def _():
        scan(lambda s: s)                  # forward direction: t = 0 .. T-1

    @pl.when(d == 1)
    def _():
        scan(lambda s: seq - 1 - s)        # backward direction: t = T-1 .. 0


def _run_layer(x2d, wx_s, wh_s, b_s, h0_s, *, seq, bp, hp, ndir):
    """Run one layer (both directions) fused in a single pallas_call."""
    in_f = x2d.shape[1]
    kernel = functools.partial(_rnn_layer_kernel, seq=seq, bp=bp)
    return pl.pallas_call(
        kernel,
        out_shape=jax.ShapeDtypeStruct((seq * bp, ndir * hp), x2d.dtype),
        grid=(ndir,),
        in_specs=[
            pl.BlockSpec((seq * bp, in_f), lambda d: (0, 0)),
            pl.BlockSpec((1, in_f, hp), lambda d: (d, 0, 0)),
            pl.BlockSpec((1, hp, hp), lambda d: (d, 0, 0)),
            pl.BlockSpec((1, 1, hp), lambda d: (d, 0, 0)),
            pl.BlockSpec((1, bp, hp), lambda d: (d, 0, 0)),
        ],
        # Each direction writes its own 128-wide column slab of one output.
        out_specs=pl.BlockSpec((seq * bp, hp), lambda d: (0, d)),
        compiler_params=pltpu.CompilerParams(
            # Directions are independent -> can split across TensorCores (v7x).
            dimension_semantics=("parallel",)),
    )(x2d, wx_s, wh_s, b_s, h0_s)


# ----------------------------------------------------------------------------
# Parameters — mirrors RNNCell.reset_parameters: W (hidden, in+hidden) and
# bias (hidden,), both U(-stdv, stdv) with stdv = 1/sqrt(hidden_size).
# ----------------------------------------------------------------------------
def init_rnn_params(key, input_size, hidden_size, num_layers, bidirectional):
    ndir = 2 if bidirectional else 1
    stdv = 1.0 / math.sqrt(hidden_size)
    params = []
    for layer in range(num_layers):
        layer_in = input_size if layer == 0 else hidden_size * ndir
        for _d in range(ndir):
            key, kw, kb = jax.random.split(key, 3)
            W = jax.random.uniform(kw, (hidden_size, layer_in + hidden_size),
                                   jnp.float32, -stdv, stdv)
            b = jax.random.uniform(kb, (hidden_size,), jnp.float32,
                                   -stdv, stdv)
            params.append((W, b))
    return params


def _pack_layer_params(params, layer, *, input_size, hidden_size, ndir, hp):
    """Split/transpose/pad the raw (W, b) params into kernel-ready tensors."""
    H = hidden_size
    layer_in = input_size if layer == 0 else H * ndir
    in_p = input_size if layer == 0 else hp * ndir   # feature dim kernel sees
    wx_s = jnp.zeros((ndir, in_p, hp), jnp.float32)
    wh_s = jnp.zeros((ndir, hp, hp), jnp.float32)
    b_s = jnp.zeros((ndir, 1, hp), jnp.float32)
    for d in range(ndir):
        W, b = params[layer * ndir + d]
        wx = W[:, :layer_in].T      # (layer_in, H)
        wh = W[:, layer_in:].T      # (H, H)
        if layer == 0:
            wx_s = wx_s.at[d, :layer_in, :H].set(wx)
        else:
            # layer input is the padded [fwd_slab(hp) | bwd_slab(hp)] layout
            for dd in range(ndir):
                wx_s = wx_s.at[d, dd * hp:dd * hp + H, :H].set(
                    wx[dd * H:(dd + 1) * H, :])
        wh_s = wh_s.at[d, :H, :H].set(wh)
        b_s = b_s.at[d, 0, :H].set(b)
    return wx_s, wh_s, b_s


# ----------------------------------------------------------------------------
# Full RNN.forward (glue) calling one fused Pallas kernel per layer.
# ----------------------------------------------------------------------------
def rnn_forward(params, x, h0=None, *, hidden_size, num_layers=1,
                batch_first=False, dropout=0.0, bidirectional=False):
    ndir = 2 if bidirectional else 1
    H = hidden_size
    hp = _round_up(H, 128)                       # lane-dense hidden
    x_tbf = jnp.transpose(x, (1, 0, 2)) if batch_first else x
    seq, batch, in_f = x_tbf.shape
    bp = _round_up(batch, 8)                     # full f32 sublanes

    if h0 is None:
        h0 = jnp.zeros((num_layers * ndir, batch, H), x.dtype)

    # Pad batch once; keep activations in flattened (seq*bp, features) layout
    # across all layers.
    x_pad = jnp.zeros((seq, bp, in_f), jnp.float32)
    x_pad = x_pad.at[:, :batch, :].set(x_tbf.astype(jnp.float32))
    layer_in2d = x_pad.reshape(seq * bp, in_f)

    for layer in range(num_layers):
        wx_s, wh_s, b_s = _pack_layer_params(
            params, layer, input_size=in_f, hidden_size=H, ndir=ndir, hp=hp)
        h0_s = jnp.zeros((ndir, bp, hp), jnp.float32)
        for d in range(ndir):
            h0_s = h0_s.at[d, :batch, :H].set(
                h0[layer * ndir + d].astype(jnp.float32))
        layer_in2d = _run_layer(layer_in2d, wx_s, wh_s, b_s, h0_s,
                                seq=seq, bp=bp, hp=hp, ndir=ndir)
        # TODO(synk): training-mode nn.Dropout between layers not implemented
        # (dropout=0.0 / eval mode is identity anyway).

    out_p = layer_in2d.reshape(seq, bp, ndir * hp)
    pieces = [out_p[:, :batch, d * hp:d * hp + H] for d in range(ndir)]
    output = pieces[0] if ndir == 1 else jnp.concatenate(pieces, axis=-1)
    output = output.astype(x.dtype)
    if batch_first:
        output = jnp.transpose(output, (1, 0, 2))

    # NOTE: the reference module never propagates updated hidden states into
    # its h_t lists, so the returned hn is exactly the initial hidden state.
    hn = h0
    return output, hn


# ----------------------------------------------------------------------------
# Pure-JAX references (mirror the PyTorch code step-by-step) for verification.
# ----------------------------------------------------------------------------
def rnncell_forward_ref(W, b, x, h_prev):
    combined = jnp.concatenate([x, h_prev], axis=1)
    return jnp.tanh(combined @ W.T + b)


def rnn_forward_ref(params, x, h0, *, hidden_size, num_layers, batch_first,
                    bidirectional):
    ndir = 2 if bidirectional else 1
    x_tbf = jnp.transpose(x, (1, 0, 2)) if batch_first else x
    seq, batch, _ = x_tbf.shape
    if h0 is None:
        h0 = jnp.zeros((num_layers * ndir, batch, hidden_size), x.dtype)

    layer_input = x_tbf
    for layer in range(num_layers):
        W, b = params[layer * ndir + 0]
        h = h0[layer * ndir + 0]
        fwd = []
        for t in range(seq):
            h = rnncell_forward_ref(W, b, layer_input[t], h)
            fwd.append(h)
        fwd = jnp.stack(fwd, axis=0)
        if bidirectional:
            Wb, bb = params[layer * ndir + 1]
            hb = h0[layer * ndir + 1]
            bwd = [None] * seq
            for t in reversed(range(seq)):
                hb = rnncell_forward_ref(Wb, bb, layer_input[t], hb)
                bwd[t] = hb
            bwd = jnp.stack(bwd, axis=0)
            layer_input = jnp.concatenate([fwd, bwd], axis=-1)
        else:
            layer_input = fwd
    out = layer_input
    if batch_first:
        out = jnp.transpose(out, (1, 0, 2))
    return out, h0


if __name__ == "__main__":
    key = jax.random.PRNGKey(0)

    # --- Test 0: the RNNCell itself (exact spec) ---------------------------
    input_size, hidden_size = 16, 32
    batch_size = 2
    stdv = 1.0 / math.sqrt(hidden_size)
    key, kw, kb, kx0, kh0 = jax.random.split(key, 5)
    W0 = jax.random.uniform(kw, (hidden_size, input_size + hidden_size),
                            jnp.float32, -stdv, stdv)
    b0 = jax.random.uniform(kb, (hidden_size,), jnp.float32, -stdv, stdv)
    xc = jax.random.normal(kx0, (batch_size, input_size), jnp.float32)
    hc = jax.random.normal(kh0, (batch_size, hidden_size), jnp.float32)

    h_next = jax.block_until_ready(rnncell_forward(W0, b0, xc, hc))
    h_next_ref = rnncell_forward_ref(W0, b0, xc, hc)
    assert h_next.shape == (batch_size, hidden_size)
    assert jnp.allclose(h_next, h_next_ref, atol=1e-5, rtol=1e-5)

    # --- Test 1: 2-layer bidirectional RNN built from the cell -------------
    num_layers, bidirectional, batch_first = 2, True, False
    seq_len = 8

    key, kp, kx = jax.random.split(key, 3)
    params = init_rnn_params(kp, input_size, hidden_size, num_layers,
                             bidirectional)
    x = jax.random.normal(kx, (seq_len, batch_size, input_size),
                          dtype=jnp.float32)

    out, hn = rnn_forward(params, x, None,
                          hidden_size=hidden_size, num_layers=num_layers,
                          batch_first=batch_first, dropout=0.0,
                          bidirectional=bidirectional)
    out = jax.block_until_ready(out)
    hn = jax.block_until_ready(hn)

    out_ref, hn_ref = rnn_forward_ref(params, x, None,
                                      hidden_size=hidden_size,
                                      num_layers=num_layers,
                                      batch_first=batch_first,
                                      bidirectional=bidirectional)
    assert out.shape == (seq_len, batch_size, hidden_size * 2)
    assert hn.shape == (num_layers * 2, batch_size, hidden_size)
    assert jnp.allclose(out, out_ref, atol=1e-4, rtol=1e-4)
    assert jnp.allclose(hn, hn_ref, atol=1e-6, rtol=1e-6)

    # --- Test 2: 1-layer unidirectional, batch_first, odd batch ------------
    key, kp2, kx2 = jax.random.split(key, 3)
    params2 = init_rnn_params(kp2, input_size, hidden_size, 1, False)
    x2 = jax.random.normal(kx2, (3, seq_len, input_size), dtype=jnp.float32)
    out2, hn2 = rnn_forward(params2, x2, None,
                            hidden_size=hidden_size, num_layers=1,
                            batch_first=True, dropout=0.0,
                            bidirectional=False)
    out2 = jax.block_until_ready(out2)
    out2_ref, _ = rnn_forward_ref(params2, x2, None,
                                  hidden_size=hidden_size, num_layers=1,
                                  batch_first=True, bidirectional=False)
    assert out2.shape == (3, seq_len, hidden_size)
    assert jnp.allclose(out2, out2_ref, atol=1e-4, rtol=1e-4)

    print("KERNEL_OK")
</pallas_src>

<mosaic_0001>
module attributes {stable_mosaic.version = 11 : i64} {
  func.func @_rnncell_kernel(%arg0: memref<8x16xf32, #tpu.memory_space<vmem>>, %arg1: memref<8x128xf32, #tpu.memory_space<vmem>>, %arg2: memref<16x128xf32, #tpu.memory_space<vmem>>, %arg3: memref<128x128xf32, #tpu.memory_space<vmem>>, %arg4: memref<1x128xf32, #tpu.memory_space<vmem>>, %arg5: memref<8x128xf32, #tpu.memory_space<vmem>>) attributes {dimension_semantics = [], scalar_prefetch = 0 : i64, scratch_operands = 0 : i64, tpu.core_type = #tpu.core_type<tc>} {
    %c0 = arith.constant 0 : index
    %c0_0 = arith.constant 0 : index
    %0 = vector.load %arg0[%c0, %c0_0] : memref<8x16xf32, #tpu.memory_space<vmem>>, vector<8x16xf32>
    %c0_1 = arith.constant 0 : index
    %c0_2 = arith.constant 0 : index
    %1 = vector.load %arg2[%c0_1, %c0_2] : memref<16x128xf32, #tpu.memory_space<vmem>>, vector<16x128xf32>
    %cst = arith.constant dense<0.000000e+00> : vector<8x128xf32>
    %2 = tpu.matmul %0, %1, %cst {dimension_numbers = #tpu.dot_dimension_numbers<[1], [0], [0], [1], [0, 0, 1, 1], [], []>} : vector<8x16xf32>, vector<16x128xf32>, vector<8x128xf32> -> vector<8x128xf32>
    %c0_3 = arith.constant 0 : index
    %c0_4 = arith.constant 0 : index
    %3 = vector.load %arg1[%c0_3, %c0_4] : memref<8x128xf32, #tpu.memory_space<vmem>>, vector<8x128xf32>
    %c0_5 = arith.constant 0 : index
    %c0_6 = arith.constant 0 : index
    %4 = vector.load %arg3[%c0_5, %c0_6] : memref<128x128xf32, #tpu.memory_space<vmem>>, vector<128x128xf32>
    %cst_7 = arith.constant dense<0.000000e+00> : vector<8x128xf32>
    %5 = tpu.matmul %3, %4, %cst_7 {dimension_numbers = #tpu.dot_dimension_numbers<[1], [0], [0], [1], [0, 0, 1, 1], [], []>} : vector<8x128xf32>, vector<128x128xf32>, vector<8x128xf32> -> vector<8x128xf32>
    %6 = arith.addf %2, %5 : vector<8x128xf32>
    %c0_8 = arith.constant 0 : index
    %c0_9 = arith.constant 0 : index
    %7 = vector.load %arg4[%c0_8, %c0_9] : memref<1x128xf32, #tpu.memory_space<vmem>>, vector<1x128xf32>
    %8 = vector.broadcast %7 : vector<1x128xf32> to vector<8x128xf32>
    %9 = arith.addf %6, %8 : vector<8x128xf32>
    %10 = math.tanh %9 : vector<8x128xf32>
    %c0_10 = arith.constant 0 : index
    %c0_11 = arith.constant 0 : index
    %11 = vector.load %arg5[%c0_10, %c0_11] : memref<8x128xf32, #tpu.memory_space<vmem>>, vector<8x128xf32>
    tpu.vector_store %arg5[%c0_10, %c0_11], %10 {strides = array<i32>} : memref<8x128xf32, #tpu.memory_space<vmem>>, vector<8x128xf32>,
    return
  }
}

</mosaic_0001>

<llo_original>
// kernel: tpu_custom_call.1
$region0: #{tpu_custom_call.1}
  #allocation0 [shape = 'u32[]', space=smem, size = 0x4, offset = 0x4, fixed_abs, tag = 'smem constant byte address 0x4 - core index']
  #allocation1 [shape = 'u32[144,128]{1,0:T(1,128)}', space=vmem, size = 0x12000, scoped, tag = 'internal scratch']
  %s0 = inlined_call_operand.hbm [shape: f32[8,16], index: 0, kind: input, shape index: {}]
  %s1 = inlined_call_operand.hbm [shape: f32[8,128], index: 1, kind: input, shape index: {}]
  %s2 = inlined_call_operand.hbm [shape: f32[16,128], index: 2, kind: input, shape index: {}]
  %s3 = inlined_call_operand.hbm [shape: f32[128,128], index: 3, kind: input, shape index: {}]
  %s4 = inlined_call_operand.vmem [shape: f32[1,128], index: 4, kind: input, shape index: {}]
  %s5 = inlined_call_operand.hbm [shape: f32[8,128], index: 5, kind: output, shape index: {}]
  %s6 = sld [smem:[#allocation0]]
  $region46: #{tpu_custom_call.1} parent=0
    _
  %s8 = ssub.s32 1, %s6
  %s9 = scalar_select 0, %s8, %s6
  $region1: #{tpu_custom_call.1} parent=0
    #allocation2 [shape = 'u8[4096]{0}', space=vmem, size = 0x1000, scoped, tag = 'input window, operand 0, single buffered']
    #allocation3 [shape = 's32[1]{0}', space=sflag, size = 0x4, scoped, tag = 'scoped memory for tpu_custom_call.1']
    #allocation4 [shape = 's32[1]{0}', space=sflag, size = 0x4, scoped, tag = 'scoped memory for tpu_custom_call.1']
    #allocation5 [shape = 'u8[4096]{0}', space=vmem, size = 0x1000, scoped, tag = 'input window, operand 1, single buffered']
    #allocation6 [shape = 's32[1]{0}', space=sflag, size = 0x4, scoped, tag = 'scoped memory for tpu_custom_call.1']
    #allocation7 [shape = 'u8[8192]{0}', space=vmem, size = 0x2000, scoped, tag = 'input window, operand 2, single buffered']
    #allocation8 [shape = 'u8[65536]{0}', space=vmem, size = 0x10000, scoped, tag = 'input window, operand 3, single buffered']
    #allocation9 [shape = 's32[1]{0}', space=sflag, size = 0x4, scoped, tag = 'scoped memory for tpu_custom_call.1']
    #allocation10 [shape = 'u8[4096]{0}', space=vmem, size = 0x1000, scoped, tag = 'output window, operand 0, single buffered']
    %10 = vsyncpa [#allocation3], 0
    %11 = vsyncpa [#allocation6], 0
    %12 = vsyncpa [#allocation9], 0
    %13 = vsyncpa [#allocation4], 0
    // Predicated region
    $region2: #{tpu_custom_call.1} parent=1 // pred_check
      _
    $region3: #{tpu_custom_call.1} parent=1 // pred_check_branch
      %15 = sbr.rel (0) target = $region5
    $region4: #{tpu_custom_call.1} parent=1 // pred_region
      %s17 = ssub.s32 128, 128
      %18 = vsyncadd [#allocation3], %s17
      %s20 = sshll.u32 [#allocation2], 4
      %s21 = int_to_ptr.vmem [resolvable:$true] %s20
      %23 = dma.hbm_to_vmem [thread:$0]  %s0, 128, %s21, [#allocation3]
    $region5: #{tpu_custom_call.1} parent=1 // pred_fallthru
      _
    // Predicated region
    $region6: #{tpu_custom_call.1} parent=1 // pred_check
      _
    $region7: #{tpu_custom_call.1} parent=1 // pred_check_branch
      %25 = sbr.rel (0) target = $region9
    $region8: #{tpu_custom_call.1} parent=1 // pred_region
      %s27 = ssub.s32 128, 128
      %28 = vsyncadd [#allocation6], %s27
      %s30 = sshll.u32 [#allocation5], 4
      %s31 = int_to_ptr.vmem [resolvable:$true] %s30
      %33 = dma.hbm_to_vmem [thread:$0]  %s1, 128, %s31, [#allocation6]
    $region9: #{tpu_custom_call.1} parent=1 // pred_fallthru
      _
    // Predicated region
    $region10: #{tpu_custom_call.1} parent=1 // pred_check
      _
    $region11: #{tpu_custom_call.1} parent=1 // pred_check_branch
      %35 = sbr.rel (0) target = $region13
    $region12: #{tpu_custom_call.1} parent=1 // pred_region
      %s37 = ssub.s32 256, 256
      %38 = vsyncadd [#allocation6], %s37
      %s39 = sshll.u32 [#allocation7], 4
      %s40 = int_to_ptr.vmem [resolvable:$true] %s39
      %45 = dma.hbm_to_vmem [thread:$0]  %s2, 256, %s40, [#allocation6], 128, 128, 8
    $region13: #{tpu_custom_call.1} parent=1 // pred_fallthru
      _
    // Predicated region
    $region14: #{tpu_custom_call.1} parent=1 // pred_check
      _
    $region15: #{tpu_custom_call.1} parent=1 // pred_check_branch
      %47 = sbr.rel (0) target = $region17
    $region16: #{tpu_custom_call.1} parent=1 // pred_region
      %s49 = ssub.s32 2048, 2048
      %50 = vsyncadd [#allocation9], %s49
      %s51 = sshll.u32 [#allocation8], 4
      %s52 = int_to_ptr.vmem [resolvable:$true] %s51
      %57 = dma.hbm_to_vmem [thread:$0]  %s3, 2048, %s52, [#allocation9], 128, 128, 8
    $region17: #{tpu_custom_call.1} parent=1 // pred_fallthru
      _
    // Predicated region
    $region18: #{tpu_custom_call.1} parent=1 // pred_check
      _
    $region19: #{tpu_custom_call.1} parent=1 // pred_check_branch
      %59 = sbr.rel (0) target = $region21
    $region20: #{tpu_custom_call.1} parent=1 // pred_region
      _
    $region21: #{tpu_custom_call.1} parent=1 // pred_fallthru
      _
    // Predicated region
    $region22: #{tpu_custom_call.1} parent=1 // pred_check
      _
    $region23: #{tpu_custom_call.1} parent=1 // pred_check_branch
      %61 = sbr.rel (0) target = $region25
    $region24: #{tpu_custom_call.1} parent=1 // pred_region
      %62 = dma.done [#allocation3], 128
    $region25: #{tpu_custom_call.1} parent=1 // pred_fallthru
      _
    // Predicated region
    $region26: #{tpu_custom_call.1} parent=1 // pred_check
      _
    $region27: #{tpu_custom_call.1} parent=1 // pred_check_branch
      %64 = sbr.rel (0) target = $region29
    $region28: #{tpu_custom_call.1} parent=1 // pred_region
      %65 = dma.done [#allocation6], 128
    $region29: #{tpu_custom_call.1} parent=1 // pred_fallthru
      _
    // Predicated region
    $region30: #{tpu_custom_call.1} parent=1 // pred_check
      _
    $region31: #{tpu_custom_call.1} parent=1 // pred_check_branch
      %67 = sbr.rel (0) target = $region33
    $region32: #{tpu_custom_call.1} parent=1 // pred_region
      %68 = dma.done [#allocation6], 256
    $region33: #{tpu_custom_call.1} parent=1 // pred_fallthru
      _
    // Predicated region
    $region34: #{tpu_custom_call.1} parent=1 // pred_check
      _
    $region35: #{tpu_custom_call.1} parent=1 // pred_check_branch
      %70 = sbr.rel (0) target = $region37
    $region36: #{tpu_custom_call.1} parent=1 // pred_region
      %71 = dma.done [#allocation9], 2048
    $region37: #{tpu_custom_call.1} parent=1 // pred_fallthru
      _
    %v72 = vld [vmem:[#allocation2] sm:$0xff]
    %v73 = vld [vmem:[#allocation7] sm:$0xff]
    %v74 = vld [vmem:[#allocation7 + $0x8] sm:$0xff]
    %v75 = vld [vmem:[#allocation5] sm:$0xff]
    %v76 = vld [vmem:[#allocation8] sm:$0xff]
    %v77 = vld [vmem:[#allocation8 + $0x8] sm:$0xff]
    %v78 = vld [vmem:[#allocation8 + $0x10] sm:$0xff]
    %v79 = vld [vmem:[#allocation8 + $0x18] sm:$0xff]
    %v80 = vld [vmem:[#allocation8 + $0x20] sm:$0xff]
    %v81 = vld [vmem:[#allocation8 + $0x28] sm:$0xff]
    %v82 = vld [vmem:[#allocation8 + $0x30] sm:$0xff]
    %v83 = vld [vmem:[#allocation8 + $0x38] sm:$0xff]
    %v84 = vld [vmem:[#allocation8 + $0x40] sm:$0xff]
    %v85 = vld [vmem:[#allocation8 + $0x48] sm:$0xff]
    %v86 = vld [vmem:[#allocation8 + $0x50] sm:$0xff]
    %v87 = vld [vmem:[#allocation8 + $0x58] sm:$0xff]
    %v88 = vld [vmem:[#allocation8 + $0x60] sm:$0xff]
    %v89 = vld [vmem:[#allocation8 + $0x68] sm:$0xff]
    %v90 = vld [vmem:[#allocation8 + $0x70] sm:$0xff]
    %v91 = vld [vmem:[#allocation8 + $0x78] sm:$0xff]
    %92 = vmatprep.subr.mxu0 0.0
    %93 = vmatpush1.msra.mxu0 %v76
    %94 = vmatprep.subr.mxu0 0.0
    %95 = vmatpush1.msra.mxu0 %v77
    %96 = vmatprep.subr.mxu0 0.0
    %97 = vmatpush1.msra.mxu0 %v78
    %98 = vmatprep.subr.mxu0 0.0
    %99 = vmatpush1.msra.mxu0 %v79
    %100 = vmatprep.subr.mxu0 0.0
    %101 = vmatpush1.msra.mxu0 %v80
    %102 = vmatprep.subr.mxu0 0.0
    %103 = vmatpush1.msra.mxu0 %v81
    %104 = vmatprep.subr.mxu0 0.0
    %105 = vmatpush1.msra.mxu0 %v82
    %106 = vmatprep.subr.mxu0 0.0
    %107 = vmatpush1.msra.mxu0 %v83
    %108 = vmatprep.subr.mxu0 0.0
    %109 = vmatpush1.msra.mxu0 %v84
    %110 = vmatprep.subr.mxu0 0.0
    %111 = vmatpush1.msra.mxu0 %v85
    %112 = vmatprep.subr.mxu0 0.0
    %113 = vmatpush1.msra.mxu0 %v86
    %114 = vmatprep.subr.mxu0 0.0
    %115 = vmatpush1.msra.mxu0 %v87
    %116 = vmatprep.subr.mxu0 0.0
    %117 = vmatpush1.msra.mxu0 %v88
    %118 = vmatprep.subr.mxu0 0.0
    %119 = vmatpush1.msra.mxu0 %v89
    %120 = vmatprep.subr.mxu0 0.0
    %121 = vmatpush1.msra.mxu0 %v90
    %122 = vmatprep.subr.mxu0 0.0
    %123 = vmatpush1.msra.mxu0 %v91
    %124 = vmatprep.subr.mxu0 0.0
    %125 = vmatpush1.msra.mxu0 0.0
    %126 = vmatprep.subr.mxu0 0.0
    %127 = vmatpush1.msra.mxu0 0.0
    %128 = vmatprep.subr.mxu0 0.0
    %129 = vmatpush1.msra.mxu0 0.0
    %130 = vmatprep.subr.mxu0 0.0
    %131 = vmatpush1.msra.mxu0 0.0
    %132 = vmatprep.subr.mxu0 0.0
    %133 = vmatpush1.msra.mxu0 0.0
    %134 = vmatprep.subr.mxu0 0.0
    %135 = vmatpush1.msra.mxu0 0.0
    %136 = vmatprep.subr.mxu0 0.0
    %137 = vmatpush1.msra.mxu0 0.0
    %138 = vmatprep.subr.mxu0 0.0
    %139 = vmatpush1.msra.mxu0 0.0
    %140 = vmatprep.subr.mxu0 0.0
    %141 = vmatpush1.msra.mxu0 0.0
    %142 = vmatprep.subr.mxu0 0.0
    %143 = vmatpush1.msra.mxu0 0.0
    %144 = vmatprep.subr.mxu0 0.0
    %145 = vmatpush1.msra.mxu0 0.0
    %146 = vmatprep.subr.mxu0 0.0
    %147 = vmatpush1.msra.mxu0 0.0
    %148 = vmatprep.subr.mxu0 0.0
    %149 = vmatpush1.msra.mxu0 0.0
    %150 = vmatprep.subr.mxu0 0.0
    %151 = vmatpush1.msra.mxu0 0.0
    %152 = vmatprep.subr.mxu0 0.0
    %153 = vmatpush1.msra.mxu0 0.0
    %154 = vmatprep.subr.mxu0 0.0
    %155 = vmatpush1.msra.mxu0 0.0
    %156 = vmatprep.mubr.f32.mxu0 0.0
    %157 = vmatmul.mubr.f32.gmra.mrb[0].mxu0 %v75
    %v158 = vpop.f32.mrb[0].mxu0
    %v159 = vadd.f32 0.0, %v158
    %v160 = vpop.f32.mrb[0].mxu0
    %161 = vdwg.mxu0
    %vm162 = vcmask 130048
    %v164 = vsel %vm162, %v72, 0
    %166 = vmatprep.subr.mxu0 0.0
    %167 = vmatpush1.msra.mxu0 %v73
    %168 = vmatprep.subr.mxu0 0.0
    %169 = vmatpush1.msra.mxu0 %v74
    %170 = vmatprep.subr.mxu0 0.0
    %171 = vmatpush1.msra.mxu0 0.0
    %172 = vmatprep.subr.mxu0 0.0
    %173 = vmatpush1.msra.mxu0 0.0
    %174 = vmatprep.subr.mxu0 0.0
    %175 = vmatpush1.msra.mxu0 0.0
    %176 = vmatprep.subr.mxu0 0.0
    %177 = vmatpush1.msra.mxu0 0.0
    %178 = vmatprep.subr.mxu0 0.0
    %179 = vmatpush1.msra.mxu0 0.0
    %180 = vmatprep.subr.mxu0 0.0
    %181 = vmatpush1.msra.mxu0 0.0
    %182 = vmatprep.subr.mxu0 0.0
    %183 = vmatpush1.msra.mxu0 0.0
    %184 = vmatprep.subr.mxu0 0.0
    %185 = vmatpush1.msra.mxu0 0.0
    %186 = vmatprep.subr.mxu0 0.0
    %187 = vmatpush1.msra.mxu0 0.0
    %188 = vmatprep.subr.mxu0 0.0
    %189 = vmatpush1.msra.mxu0 0.0
    %190 = vmatprep.subr.mxu0 0.0
    %191 = vmatpush1.msra.mxu0 0.0
    %192 = vmatprep.subr.mxu0 0.0
    %193 = vmatpush1.msra.mxu0 0.0
    %194 = vmatprep.subr.mxu0 0.0
    %195 = vmatpush1.msra.mxu0 0.0
    %196 = vmatprep.subr.mxu0 0.0
    %197 = vmatpush1.msra.mxu0 0.0
    %198 = vmatprep.subr.mxu0 0.0
    %199 = vmatpush1.msra.mxu0 0.0
    %200 = vmatprep.subr.mxu0 0.0
    %201 = vmatpush1.msra.mxu0 0.0
    %202 = vmatprep.subr.mxu0 0.0
    %203 = vmatpush1.msra.mxu0 0.0
    %204 = vmatprep.subr.mxu0 0.0
    %205 = vmatpush1.msra.mxu0 0.0
    %206 = vmatprep.subr.mxu0 0.0
    %207 = vmatpush1.msra.mxu0 0.0
    %208 = vmatprep.subr.mxu0 0.0
    %209 = vmatpush1.msra.mxu0 0.0
    %210 = vmatprep.subr.mxu0 0.0
    %211 = vmatpush1.msra.mxu0 0.0
    %212 = vmatprep.subr.mxu0 0.0
    %213 = vmatpush1.msra.mxu0 0.0
    %214 = vmatprep.subr.mxu0 0.0
    %215 = vmatpush1.msra.mxu0 0.0
    %216 = vmatprep.subr.mxu0 0.0
    %217 = vmatpush1.msra.mxu0 0.0
    %218 = vmatprep.subr.mxu0 0.0
    %219 = vmatpush1.msra.mxu0 0.0
    %220 = vmatprep.subr.mxu0 0.0
    %221 = vmatpush1.msra.mxu0 0.0
    %222 = vmatprep.subr.mxu0 0.0
    %223 = vmatpush1.msra.mxu0 0.0
    %224 = vmatprep.subr.mxu0 0.0
    %225 = vmatpush1.msra.mxu0 0.0
    %226 = vmatprep.subr.mxu0 0.0
    %227 = vmatpush1.msra.mxu0 0.0
    %228 = vmatprep.subr.mxu0 0.0
    %229 = vmatpush1.msra.mxu0 0.0
    %230 = vmatprep.mubr.f32.mxu0 0.0
    %231 = vmatmul.mubr.f32.gmra.mrb[0].mxu0 %v164
    %v232 = vpop.f32.mrb[0].mxu0
    %v233 = vadd.f32 %v159, %v232
    %v234 = vpop.f32.mrb[0].mxu0
    %235 = vdwg.mxu0
    %v236 = vld [vmem:[%s4] sm:$0x1]
    %v238 = vlaneseq
    %v239 = vshrl.u32 %v238, 7
    %v240 = vsub.s32 0, %v239
    %v241 = vrot.slane %v236, %v240
    %v243 = vadd.f32 %v233, %v241
    %v244 = vtanh.pop %v243
    %245 = vst [vmem:[#allocation10] sm:$0xff] %v244
    // Predicated region
    $region38: #{tpu_custom_call.1} parent=1 // pred_check
      _
    $region39: #{tpu_custom_call.1} parent=1 // pred_check_branch
      %247 = sbr.rel (0) target = $region41
    $region40: #{tpu_custom_call.1} parent=1 // pred_region
      %s249 = ssub.s32 128, 128
      %250 = vsyncadd [#allocation4], %s249
      %s252 = sshll.u32 [#allocation10], 4
      %s253 = int_to_ptr.vmem [resolvable:$true] %s252
      %255 = dma.vmem_to_hbm [thread:$0]  %s253, 128, %s5, [#allocation4]
    $region41: #{tpu_custom_call.1} parent=1 // pred_fallthru
      _
    // Predicated region
    $region42: #{tpu_custom_call.1} parent=1 // pred_check
      _
    $region43: #{tpu_custom_call.1} parent=1 // pred_check_branch
      %257 = sbr.rel (0) target = $region45
    $region44: #{tpu_custom_call.1} parent=1 // pred_region
      %258 = dma.done [#allocation4], 128
    $region45: #{tpu_custom_call.1} parent=1 // pred_fallthru
      _
    %259 = vsyncpa [#allocation3], 1
    %260 = vsyncpa [#allocation6], 1
    %261 = vsyncpa [#allocation9], 1
    %262 = vsyncpa [#allocation4], 1

</llo_original>
